<compile_context>
chip_gen: v7x
topology: tpu7x:2x2x1
jax: 0.10.0
libtpu: 0.0.40
codegen_flags: <defaults>
</compile_context>

<pallas_src>
import jax
import jax.numpy as jnp
from jax.experimental import pallas as pl
from jax.experimental.pallas import tpu as pltpu


def _round_up(x, m):
    return ((x + m - 1) // m) * m


def _make_kernel(T, S):
    """Builds the kernel for a fixed token-block size T and sequence length S."""

    def kernel(ids_ref, tt_ref, w_ref, p_ref, t_ref, g_ref, b_ref, o_ref, x_ref):
        # ids_ref / tt_ref : SMEM, flat padded token ids / token-type ids (scalar prefetch)
        # w_ref  : (V, H) word table, VMEM-resident
        # p_ref  : (P, H) position table, VMEM-resident
        # t_ref  : (2, H) token-type table, VMEM-resident
        # g_ref, b_ref : (1, H) LayerNorm gamma / beta
        # o_ref  : (T, H) output block
        # x_ref  : (T, H) f32 scratch slab
        base = pl.program_id(0) * T

        # Per-token gather + sum into the (T, H) scratch slab. Tables live in VMEM,
        # so each iteration is a few cheap VMEM row loads + one row store.
        @pl.loop(0, T)
        def _(t):
            tok = base + t
            wid = ids_ref[tok]
            tid = tt_ref[tok]
            pid = tok % S                      # default BERT position ids: 0..S-1
            row = (w_ref[pl.ds(wid, 1), :].astype(jnp.float32)
                   + p_ref[pl.ds(pid, 1), :].astype(jnp.float32)
                   + t_ref[pl.ds(tid, 1), :].astype(jnp.float32))
            x_ref[pl.ds(t, 1), :] = row

        # Fused LayerNorm (eps = 1e-12, matching nn.LayerNorm) on the dense slab.
        x = x_ref[...]
        mean = jnp.mean(x, axis=-1, keepdims=True)
        xc = x - mean
        var = jnp.mean(xc * xc, axis=-1, keepdims=True)
        inv = jax.lax.rsqrt(var + 1e-12) * g_ref[...].astype(jnp.float32)   # (T,1)*(1,H)
        y = xc * inv + b_ref[...].astype(jnp.float32)
        o_ref[...] = y.astype(o_ref.dtype)

    return kernel


def bert_embeddings(input_ids, token_type_ids, word_table, pos_table, type_table,
                    gamma, beta, *, block_tokens=256):
    B, S = input_ids.shape
    V, H = word_table.shape
    P = pos_table.shape[0]

    N = B * S
    # Token-block size: multiple of 8, capped by the (rounded-up) token count.
    T = max(8, min(_round_up(block_tokens, 8), _round_up(N, 8)))
    N_pad = _round_up(N, T)
    G = N_pad // T

    ids_flat = jnp.zeros((N_pad,), jnp.int32).at[:N].set(
        input_ids.reshape(-1).astype(jnp.int32))
    tt_flat = jnp.zeros((N_pad,), jnp.int32).at[:N].set(
        token_type_ids.reshape(-1).astype(jnp.int32))

    gamma2 = gamma.reshape(1, H)
    beta2 = beta.reshape(1, H)

    # Scoped-VMEM budget: resident tables (double-buffered by the pipeline) + output
    # block double-buffer + scratch slab, with headroom. Safe everywhere at these sizes.
    table_bytes = (word_table.nbytes + pos_table.nbytes + type_table.nbytes
                   + gamma2.nbytes + beta2.nbytes)
    block_bytes = T * H * 4
    vmem_limit = int(min(max(2 * table_bytes + 6 * block_bytes, 32 * 1024 * 1024),
                         112 * 1024 * 1024))

    out = pl.pallas_call(
        _make_kernel(T, S),
        out_shape=jax.ShapeDtypeStruct((N_pad, H), jnp.float32),
        grid_spec=pltpu.PrefetchScalarGridSpec(
            num_scalar_prefetch=2,              # ids_flat, tt_flat land in SMEM
            grid=(G,),
            in_specs=[
                # Full tables resident in VMEM (constant block index => DMA'd once).
                pl.BlockSpec((V, H), lambda i, ids, tt: (0, 0)),   # word table
                pl.BlockSpec((P, H), lambda i, ids, tt: (0, 0)),   # position table
                pl.BlockSpec((2, H), lambda i, ids, tt: (0, 0)),   # token-type table
                pl.BlockSpec((1, H), lambda i, ids, tt: (0, 0)),   # LayerNorm gamma
                pl.BlockSpec((1, H), lambda i, ids, tt: (0, 0)),   # LayerNorm beta
            ],
            out_specs=pl.BlockSpec((T, H), lambda i, ids, tt: (i, 0)),
            scratch_shapes=[pltpu.VMEM((T, H), jnp.float32)],
        ),
        compiler_params=pltpu.CompilerParams(
            dimension_semantics=("parallel",),
            vmem_limit_bytes=vmem_limit,
        ),
    )(ids_flat, tt_flat, word_table, pos_table, type_table, gamma2, beta2)

    return out[:N].reshape(B, S, H)


def reference(input_ids, token_type_ids, word_table, pos_table, type_table, gamma, beta):
    B, S = input_ids.shape
    pos_ids = jnp.broadcast_to(jnp.arange(S), (B, S))
    x = word_table[input_ids] + pos_table[pos_ids] + type_table[token_type_ids]
    mean = jnp.mean(x, axis=-1, keepdims=True)
    var = jnp.mean((x - mean) ** 2, axis=-1, keepdims=True)
    xn = (x - mean) * jax.lax.rsqrt(var + 1e-12)
    return xn * gamma + beta


if __name__ == "__main__":
    vocab_size = 64
    hidden_size = 128
    max_position_embeddings = 32

    key = jax.random.PRNGKey(0)
    k_w, k_p, k_t, k_ids, k_tt = jax.random.split(key, 5)

    word_table = jax.random.normal(k_w, (vocab_size, hidden_size), jnp.float32) * 0.02
    pos_table = jax.random.normal(k_p, (max_position_embeddings, hidden_size),
                                  jnp.float32) * 0.02
    type_table = jax.random.normal(k_t, (2, hidden_size), jnp.float32) * 0.02
    gamma = jnp.ones((hidden_size,), jnp.float32)
    beta = jnp.zeros((hidden_size,), jnp.float32)

    # Case 1: small shape, single token block.
    B1, S1 = 2, 8
    ids1 = jax.random.randint(k_ids, (B1, S1), 0, vocab_size, jnp.int32)
    tt1 = jax.random.randint(k_tt, (B1, S1), 0, 2, jnp.int32)
    out1 = jax.block_until_ready(
        bert_embeddings(ids1, tt1, word_table, pos_table, type_table, gamma, beta))
    ref1 = reference(ids1, tt1, word_table, pos_table, type_table, gamma, beta)
    assert out1.shape == (B1, S1, hidden_size)
    assert jnp.allclose(out1, ref1, atol=1e-5, rtol=1e-5)

    # Case 2: multi-block grid with padding (B*S = 72 -> T = 16, 5 blocks, 80 padded).
    B2, S2 = 3, 24
    ids2 = jax.random.randint(jax.random.fold_in(k_ids, 1), (B2, S2), 0,
                              vocab_size, jnp.int32)
    tt2 = jax.random.randint(jax.random.fold_in(k_tt, 1), (B2, S2), 0, 2, jnp.int32)
    out2 = jax.block_until_ready(
        bert_embeddings(ids2, tt2, word_table, pos_table, type_table, gamma, beta,
                        block_tokens=16))
    ref2 = reference(ids2, tt2, word_table, pos_table, type_table, gamma, beta)
    assert out2.shape == (B2, S2, hidden_size)
    assert jnp.allclose(out2, ref2, atol=1e-5, rtol=1e-5)

    print("KERNEL_OK")
</pallas_src>

<mosaic_0001>
module attributes {stable_mosaic.version = 11 : i64} {
  func.func @kernel(%arg0: i32, %arg1: memref<16xi32, #tpu.memory_space<smem>>, %arg2: memref<16xi32, #tpu.memory_space<smem>>, %arg3: memref<64x128xf32, #tpu.memory_space<vmem>>, %arg4: memref<32x128xf32, #tpu.memory_space<vmem>>, %arg5: memref<2x128xf32, #tpu.memory_space<vmem>>, %arg6: memref<1x128xf32, #tpu.memory_space<vmem>>, %arg7: memref<1x128xf32, #tpu.memory_space<vmem>>, %arg8: memref<16x128xf32, #tpu.memory_space<vmem>>, %arg9: memref<16x128xf32, #tpu.memory_space<vmem>>) attributes {dimension_semantics = [#tpu.dimension_semantics<parallel>], iteration_bounds = array<i64: 1>, scalar_prefetch = 2 : i64, scratch_operands = 1 : i64, tpu.core_type = #tpu.core_type<tc>, window_params = [{pipeline_mode = #tpu.pipeline_mode<synchronous>, transform_indices = @transform_0, window_bounds = array<i64: 64, 128>}, {pipeline_mode = #tpu.pipeline_mode<synchronous>, transform_indices = @transform_1, window_bounds = array<i64: 32, 128>}, {pipeline_mode = #tpu.pipeline_mode<synchronous>, transform_indices = @transform_2, window_bounds = array<i64: 2, 128>}, {pipeline_mode = #tpu.pipeline_mode<synchronous>, transform_indices = @transform_3, window_bounds = array<i64: 1, 128>}, {pipeline_mode = #tpu.pipeline_mode<synchronous>, transform_indices = @transform_4, window_bounds = array<i64: 1, 128>}, {transform_indices = @transform_5, window_bounds = array<i64: 16, 128>}]} {
    %c16_i32 = arith.constant 16 : i32
    %0 = arith.muli %arg0, %c16_i32 : i32
    %c0_i32 = arith.constant 0 : i32
    %c16_i32_0 = arith.constant 16 : i32
    %1 = arith.addi %c0_i32, %c16_i32_0 : i32
    %c1_i32 = arith.constant 1 : i32
    scf.for %arg10 = %c0_i32 to %1 step %c1_i32  : i32 {
      %c1_i32_13 = arith.constant 1 : i32
      %26 = arith.muli %arg10, %c1_i32_13 : i32
      %c0_i32_14 = arith.constant 0 : i32
      %27 = arith.addi %c0_i32_14, %26 : i32
      %28 = arith.addi %0, %27 : i32
      %29 = arith.index_cast %28 : i32 to index
      %30 = memref.load %arg1[%29] : memref<16xi32, #tpu.memory_space<smem>>
      %31 = arith.index_cast %28 : i32 to index
      %32 = memref.load %arg2[%31] : memref<16xi32, #tpu.memory_space<smem>>
      %c8_i32 = arith.constant 8 : i32
      %c0_i32_15 = arith.constant 0 : i32
      %33 = arith.cmpi eq, %c8_i32, %c0_i32_15 : i32
      %c1_i32_16 = arith.constant 1 : i32
      %34 = arith.select %33, %c1_i32_16, %c8_i32 : i32
      %35 = arith.remsi %28, %34 : i32
      %c0_i32_17 = arith.constant 0 : i32
      %36 = arith.cmpi ne, %35, %c0_i32_17 : i32
      %c0_i32_18 = arith.constant 0 : i32
      %37 = arith.cmpi slt, %35, %c0_i32_18 : i32
      %c0_i32_19 = arith.constant 0 : i32
      %38 = arith.cmpi slt, %34, %c0_i32_19 : i32
      %39 = arith.xori %37, %38 : i1
      %40 = arith.andi %39, %36 : i1
      %41 = arith.addi %35, %34 : i32
      %42 = arith.select %40, %41, %35 : i32
      %43 = arith.index_cast %30 : i32 to index
      %c0_20 = arith.constant 0 : index
      %44 = vector.load %arg3[%43, %c0_20] : memref<64x128xf32, #tpu.memory_space<vmem>>, vector<1x128xf32>
      %45 = arith.index_cast %42 : i32 to index
      %c0_21 = arith.constant 0 : index
      %46 = vector.load %arg4[%45, %c0_21] : memref<32x128xf32, #tpu.memory_space<vmem>>, vector<1x128xf32>
      %47 = arith.addf %44, %46 : vector<1x128xf32>
      %48 = arith.index_cast %32 : i32 to index
      %c0_22 = arith.constant 0 : index
      %49 = vector.load %arg5[%48, %c0_22] : memref<2x128xf32, #tpu.memory_space<vmem>>, vector<1x128xf32>
      %50 = arith.addf %47, %49 : vector<1x128xf32>
      %51 = arith.index_cast %27 : i32 to index
      %c0_23 = arith.constant 0 : index
      %52 = vector.load %arg9[%51, %c0_23] : memref<16x128xf32, #tpu.memory_space<vmem>>, vector<1x128xf32>
      tpu.vector_store %arg9[%51, %c0_23], %50 {strides = array<i32>} : memref<16x128xf32, #tpu.memory_space<vmem>>, vector<1x128xf32>,
    }
    %c16_i32_1 = arith.constant 16 : i32
    %c0 = arith.constant 0 : index
    %c0_2 = arith.constant 0 : index
    %2 = vector.load %arg9[%c0, %c0_2] : memref<16x128xf32, #tpu.memory_space<vmem>>, vector<16x128xf32>
    %cst = arith.constant dense<0.000000e+00> : vector<16xf32>
    %3 = vector.multi_reduction <add>, %2, %cst [1] : vector<16x128xf32> to vector<16xf32>
    %4 = vector.shape_cast %3 : vector<16xf32> to vector<16x1xf32>
    %cst_3 = arith.constant 1.280000e+02 : f32
    %5 = vector.broadcast %cst_3 : f32 to vector<16x1xf32>
    %6 = arith.divf %4, %5 : vector<16x1xf32>
    %7 = vector.broadcast %6 : vector<16x1xf32> to vector<16x128xf32>
    %8 = arith.subf %2, %7 : vector<16x128xf32>
    %9 = arith.mulf %8, %8 : vector<16x128xf32>
    %cst_4 = arith.constant dense<0.000000e+00> : vector<16xf32>
    %10 = vector.multi_reduction <add>, %9, %cst_4 [1] : vector<16x128xf32> to vector<16xf32>
    %11 = vector.shape_cast %10 : vector<16xf32> to vector<16x1xf32>
    %cst_5 = arith.constant 1.280000e+02 : f32
    %12 = vector.broadcast %cst_5 : f32 to vector<16x1xf32>
    %13 = arith.divf %11, %12 : vector<16x1xf32>
    %cst_6 = arith.constant 9.99999996E-13 : f32
    %14 = vector.broadcast %cst_6 : f32 to vector<16x1xf32>
    %15 = arith.addf %13, %14 : vector<16x1xf32>
    %16 = math.rsqrt %15 : vector<16x1xf32>
    %c0_7 = arith.constant 0 : index
    %c0_8 = arith.constant 0 : index
    %17 = vector.load %arg6[%c0_7, %c0_8] : memref<1x128xf32, #tpu.memory_space<vmem>>, vector<1x128xf32>
    %18 = vector.broadcast %16 : vector<16x1xf32> to vector<16x128xf32>
    %19 = vector.broadcast %17 : vector<1x128xf32> to vector<16x128xf32>
    %20 = arith.mulf %18, %19 : vector<16x128xf32>
    %21 = arith.mulf %8, %20 : vector<16x128xf32>
    %c0_9 = arith.constant 0 : index
    %c0_10 = arith.constant 0 : index
    %22 = vector.load %arg7[%c0_9, %c0_10] : memref<1x128xf32, #tpu.memory_space<vmem>>, vector<1x128xf32>
    %23 = vector.broadcast %22 : vector<1x128xf32> to vector<16x128xf32>
    %24 = arith.addf %21, %23 : vector<16x128xf32>
    %c0_11 = arith.constant 0 : index
    %c0_12 = arith.constant 0 : index
    %25 = vector.load %arg8[%c0_11, %c0_12] : memref<16x128xf32, #tpu.memory_space<vmem>>, vector<16x128xf32>
    tpu.vector_store %arg8[%c0_11, %c0_12], %24 {strides = array<i32>} : memref<16x128xf32, #tpu.memory_space<vmem>>, vector<16x128xf32>,
    return
  }
  func.func @transform_0(%arg0: i32, %arg1: memref<16xi32, #tpu.memory_space<smem>>, %arg2: memref<16xi32, #tpu.memory_space<smem>>) -> (i32, i32) {
    %c0_i32 = arith.constant 0 : i32
    %c0_i32_0 = arith.constant 0 : i32
    %c0_i32_1 = arith.constant 0 : i32
    return %c0_i32, %c0_i32_0 : i32, i32
  }
  func.func @transform_1(%arg0: i32, %arg1: memref<16xi32, #tpu.memory_space<smem>>, %arg2: memref<16xi32, #tpu.memory_space<smem>>) -> (i32, i32) {
    %c0_i32 = arith.constant 0 : i32
    %c0_i32_0 = arith.constant 0 : i32
    %c0_i32_1 = arith.constant 0 : i32
    return %c0_i32, %c0_i32_0 : i32, i32
  }
  func.func @transform_2(%arg0: i32, %arg1: memref<16xi32, #tpu.memory_space<smem>>, %arg2: memref<16xi32, #tpu.memory_space<smem>>) -> (i32, i32) {
    %c0_i32 = arith.constant 0 : i32
    %c0_i32_0 = arith.constant 0 : i32
    %c0_i32_1 = arith.constant 0 : i32
    return %c0_i32, %c0_i32_0 : i32, i32
  }
  func.func @transform_3(%arg0: i32, %arg1: memref<16xi32, #tpu.memory_space<smem>>, %arg2: memref<16xi32, #tpu.memory_space<smem>>) -> (i32, i32) {
    %c0_i32 = arith.constant 0 : i32
    %c0_i32_0 = arith.constant 0 : i32
    %c0_i32_1 = arith.constant 0 : i32
    return %c0_i32, %c0_i32_0 : i32, i32
  }
  func.func @transform_4(%arg0: i32, %arg1: memref<16xi32, #tpu.memory_space<smem>>, %arg2: memref<16xi32, #tpu.memory_space<smem>>) -> (i32, i32) {
    %c0_i32 = arith.constant 0 : i32
    %c0_i32_0 = arith.constant 0 : i32
    %c0_i32_1 = arith.constant 0 : i32
    return %c0_i32, %c0_i32_0 : i32, i32
  }
  func.func @transform_5(%arg0: i32, %arg1: memref<16xi32, #tpu.memory_space<smem>>, %arg2: memref<16xi32, #tpu.memory_space<smem>>) -> (i32, i32) {
    %c0_i32 = arith.constant 0 : i32
    %c0_i32_0 = arith.constant 0 : i32
    return %arg0, %c0_i32 : i32, i32
  }
}

</mosaic_0001>

<llo_original>
// kernel: tpu_custom_call.1
$region0: #{tpu_custom_call.1}
  #allocation0 [shape = 'u32[]', space=smem, size = 0x4, offset = 0x4, fixed_abs, tag = 'smem constant byte address 0x4 - core index']
  #allocation1 [shape = 'u32[144,128]{1,0:T(1,128)}', space=vmem, size = 0x12000, scoped, tag = 'internal scratch']
  #allocation2 [shape = 'f32[16,128]{1,0:T(8,128)}', space=vmem, size = 0x2000, scoped, tag = 'scratch operand']
  #allocation3 [shape = 's32[1]{0}', space=sflag, size = 0x4, scoped, tag = 'scoped memory for tpu_custom_call.1']
  #allocation4 [shape = 'u8[512]{0}', space=smem, size = 0x200, scoped, tag = 'prefetched SMEM operand 0']
  #allocation5 [shape = 'u8[512]{0}', space=smem, size = 0x200, scoped, tag = 'prefetched SMEM operand 1']
  %s0 = inlined_call_operand.hbm [shape: s32[16], index: 0, kind: input, shape index: {}]
  %s1 = inlined_call_operand.vmem [shape: s32[16], index: 1, kind: input, shape index: {}]
  %s2 = inlined_call_operand.hbm [shape: f32[64,128], index: 2, kind: input, shape index: {}]
  %s3 = inlined_call_operand.hbm [shape: f32[32,128], index: 3, kind: input, shape index: {}]
  %s4 = inlined_call_operand.vmem [shape: f32[2,128], index: 4, kind: input, shape index: {}]
  %s5 = inlined_call_operand.vmem [shape: f32[1,128], index: 5, kind: input, shape index: {}]
  %s6 = inlined_call_operand.vmem [shape: f32[1,128], index: 6, kind: input, shape index: {}]
  %s7 = inlined_call_operand.hbm [shape: f32[16,128], index: 7, kind: output, shape index: {}]
  %s8 = sld [smem:[#allocation0]]
  $region45: #{tpu_custom_call.1} parent=0
    _
  %s10 = ssub.s32 1, %s8
  %s11 = scalar_select 0, %s10, %s8
  %13 = dma.hbm_to_smem %s0, 16, [#allocation4], [#allocation3]
  %s14 = sshll.u32 %s1, 4
  %s15 = int_to_ptr.vmem [resolvable:$true] %s14
  %17 = dma.vmem_to_smem %s15, 16, [#allocation5], [#allocation3]
  %18 = dma.done [#allocation3], 32
  %19 = sfence
  $region1: #{tpu_custom_call.1} parent=0
    #allocation6 [shape = 'u8[32768]{0}', space=vmem, size = 0x8000, scoped, tag = 'input window, operand 2, single buffered']
    #allocation7 [shape = 's32[1]{0}', space=sflag, size = 0x4, scoped, tag = 'scoped memory for tpu_custom_call.1']
    #allocation8 [shape = 's32[1]{0}', space=sflag, size = 0x4, scoped, tag = 'scoped memory for tpu_custom_call.1']
    #allocation9 [shape = 'u8[16384]{0}', space=vmem, size = 0x4000, scoped, tag = 'input window, operand 3, single buffered']
    #allocation10 [shape = 's32[1]{0}', space=sflag, size = 0x4, scoped, tag = 'scoped memory for tpu_custom_call.1']
    #allocation11 [shape = 'u8[8192]{0}', space=vmem, size = 0x2000, scoped, tag = 'output window, operand 0, single buffered']
    %20 = vsyncpa [#allocation7], 0
    %21 = vsyncpa [#allocation10], 0
    %22 = vsyncpa [#allocation8], 0
    // Predicated region
    $region2: #{tpu_custom_call.1} parent=1 // pred_check
      _
    $region3: #{tpu_custom_call.1} parent=1 // pred_check_branch
      %24 = sbr.rel (0) target = $region5
    $region4: #{tpu_custom_call.1} parent=1 // pred_region
      %s26 = ssub.s32 1024, 1024
      %27 = vsyncadd [#allocation7], %s26
      %s28 = sshll.u32 [#allocation6], 4
      %s29 = int_to_ptr.vmem [resolvable:$true] %s28
      %34 = dma.hbm_to_vmem [thread:$0]  %s2, 1024, %s29, [#allocation7], 128, 128, 8
    $region5: #{tpu_custom_call.1} parent=1 // pred_fallthru
      _
    // Predicated region
    $region6: #{tpu_custom_call.1} parent=1 // pred_check
      _
    $region7: #{tpu_custom_call.1} parent=1 // pred_check_branch
      %36 = sbr.rel (0) target = $region9
    $region8: #{tpu_custom_call.1} parent=1 // pred_region
      %s38 = ssub.s32 512, 512
      %39 = vsyncadd [#allocation10], %s38
      %s40 = sshll.u32 [#allocation9], 4
      %s41 = int_to_ptr.vmem [resolvable:$true] %s40
      %46 = dma.hbm_to_vmem [thread:$0]  %s3, 512, %s41, [#allocation10], 128, 128, 8
    $region9: #{tpu_custom_call.1} parent=1 // pred_fallthru
      _
    // Predicated region
    $region10: #{tpu_custom_call.1} parent=1 // pred_check
      _
    $region11: #{tpu_custom_call.1} parent=1 // pred_check_branch
      %48 = sbr.rel (0) target = $region13
    $region12: #{tpu_custom_call.1} parent=1 // pred_region
      _
    $region13: #{tpu_custom_call.1} parent=1 // pred_fallthru
      _
    // Predicated region
    $region14: #{tpu_custom_call.1} parent=1 // pred_check
      _
    $region15: #{tpu_custom_call.1} parent=1 // pred_check_branch
      %50 = sbr.rel (0) target = $region17
    $region16: #{tpu_custom_call.1} parent=1 // pred_region
      _
    $region17: #{tpu_custom_call.1} parent=1 // pred_fallthru
      _
    // Predicated region
    $region18: #{tpu_custom_call.1} parent=1 // pred_check
      _
    $region19: #{tpu_custom_call.1} parent=1 // pred_check_branch
      %52 = sbr.rel (0) target = $region21
    $region20: #{tpu_custom_call.1} parent=1 // pred_region
      _
    $region21: #{tpu_custom_call.1} parent=1 // pred_fallthru
      _
    // Predicated region
    $region22: #{tpu_custom_call.1} parent=1 // pred_check
      _
    $region23: #{tpu_custom_call.1} parent=1 // pred_check_branch
      %54 = sbr.rel (0) target = $region25
    $region24: #{tpu_custom_call.1} parent=1 // pred_region
      %55 = dma.done [#allocation7], 1024
    $region25: #{tpu_custom_call.1} parent=1 // pred_fallthru
      _
    // Predicated region
    $region26: #{tpu_custom_call.1} parent=1 // pred_check
      _
    $region27: #{tpu_custom_call.1} parent=1 // pred_check_branch
      %57 = sbr.rel (0) target = $region29
    $region28: #{tpu_custom_call.1} parent=1 // pred_region
      %58 = dma.done [#allocation10], 512
    $region29: #{tpu_custom_call.1} parent=1 // pred_fallthru
      _
    %s59 = smul.u32 0, 16
    loop: start=0, step=1, limit=16
    $region30: #{tpu_custom_call.1} parent=1 // loop_pre_header
      _
    $region31: #{tpu_custom_call.1} parent=1 // loop_header
      %s61 = sphi 0, %s65
      %p62 = scmp.ge.s32.totalorder %s61, 16
    $region32: #{tpu_custom_call.1} parent=1 // loop_header_branch
      %64 = sbr.rel (%p62) target = $region36
    $region33: #{tpu_custom_call.1} parent=1 // loop_body
      %s66 = sadd.s32 %s59, %s61
      %s67 = sld [smem:[#allocation4 + %s66]]
      %s68 = sld [smem:[#allocation5 + %s66]]
      %p69 = scmp.lt.s32.totalorder %s66, 0
      %s70 = ssub.s32 0, %s66
      %s71 = scalar_select %p69, %s70, %s66
      %s72 = sand.u32 %s71, 7
      %s73 = ssub.s32 0, %s72
      %s74 = scalar_select %p69, %s73, %s72
      %p75 = scmp.ne.s32.totalorder %s74, 0
      %p76 = scmp.lt.s32.totalorder %s74, 0
      %p77 = pnand %p76, %p75
      %p78 = pneg %p77
      %s79 = sadd.s32 %s74, 8
      %s80 = scalar_select %p78, %s79, %s74
      %s81 = scalar_lea.vmem [#allocation6], %s67
      %v82 = vld [vmem:[%s81] sm:$0x1]
      %s83 = scalar_lea.vmem [#allocation9], %s80
      %v84 = vld [vmem:[%s83] sm:$0x1]
      %v85 = vadd.f32 %v82, %v84
      %s86 = scalar_lea.vmem %s4, %s68
      %v87 = vld [vmem:[%s86] sm:$0x1]
      %v88 = vadd.f32 %v85, %v87
      %s89 = scalar_lea.vmem [#allocation2], %s61
      %90 = vst [vmem:[%s89] sm:$0x1] %v88
    $region34: #{tpu_custom_call.1} parent=1 // loop_footer
      %s65 = sadd.s32 1, %s61
    $region35: #{tpu_custom_call.1} parent=1 // loop_footer_branch
      %60 = sbr.rel target = $region31
    $region36: #{tpu_custom_call.1} parent=1 // loop_exit
      _
    %v91 = vld [vmem:[#allocation2] sm:$0xff]
    %v92 = vld [vmem:[#allocation2 + $0x8] sm:$0xff]
    %93 = vadd.xlane.f32.xlu0 %v91
    %v94 = vpop.xlane.xlu0 %93
    %95 = vadd.xlane.f32.xlu0 %v92
    %v96 = vpop.xlane.xlu0 %95
    %v97 = vrcp.pop 128.0
    %v98 = vmul.f32 %v94, %v97
    %v99 = vmul.f32 %v96, %v97
    %v100 = vsub.f32 %v91, %v98
    %v101 = vsub.f32 %v92, %v99
    %v102 = vmul.f32 %v100, %v100
    %v103 = vmul.f32 %v101, %v101
    %104 = vadd.xlane.f32.xlu0 %v102
    %v105 = vpop.xlane.xlu0 %104
    %106 = vadd.xlane.f32.xlu0 %v103
    %v107 = vpop.xlane.xlu0 %106
    %v108 = vmul.f32 %v105, %v97
    %v109 = vmul.f32 %v107, %v97
    %v110 = vadd.f32 %v108, 1e-12
    %v111 = vadd.f32 %v109, 1e-12
    %v112 = vrsqrt.pop %v110
    %v113 = vrsqrt.pop %v111
    %v114 = vld [vmem:[%s5] sm:$0x1]
    %v116 = vlaneseq
    %v117 = vshrl.u32 %v116, 7
    %v118 = vsub.s32 0, %v117
    %v119 = vrot.slane %v114, %v118
    %v121 = vmul.f32 %v112, %v119
    %v122 = vmul.f32 %v113, %v119
    %v123 = vmul.f32 %v100, %v121
    %v124 = vmul.f32 %v101, %v122
    %v125 = vld [vmem:[%s6] sm:$0x1]
    %v127 = vlaneseq
    %v128 = vshrl.u32 %v127, 7
    %v129 = vsub.s32 0, %v128
    %v130 = vrot.slane %v125, %v129
    %v132 = vadd.f32 %v123, %v130
    %v133 = vadd.f32 %v124, %v130
    %134 = vst [vmem:[#allocation11] sm:$0xff] %v132
    %135 = vst [vmem:[#allocation11 + $0x8] sm:$0xff] %v133
    // Predicated region
    $region37: #{tpu_custom_call.1} parent=1 // pred_check
      _
    $region38: #{tpu_custom_call.1} parent=1 // pred_check_branch
      %137 = sbr.rel (0) target = $region40
    $region39: #{tpu_custom_call.1} parent=1 // pred_region
      %s139 = ssub.s32 256, 256
      %140 = vsyncadd [#allocation8], %s139
      %s141 = sshll.u32 [#allocation11], 4
      %s142 = int_to_ptr.vmem [resolvable:$true] %s141
      %147 = dma.vmem_to_hbm [thread:$0]  %s142, 256, %s7, [#allocation8], 128, 128, 8
    $region40: #{tpu_custom_call.1} parent=1 // pred_fallthru
      _
    // Predicated region
    $region41: #{tpu_custom_call.1} parent=1 // pred_check
      _
    $region42: #{tpu_custom_call.1} parent=1 // pred_check_branch
      %149 = sbr.rel (0) target = $region44
    $region43: #{tpu_custom_call.1} parent=1 // pred_region
      %150 = dma.done [#allocation8], 256
    $region44: #{tpu_custom_call.1} parent=1 // pred_fallthru
      _
    %151 = vsyncpa [#allocation7], 1
    %152 = vsyncpa [#allocation10], 1
    %153 = vsyncpa [#allocation8], 1

</llo_original>
